<compile_context>
chip_gen: v7x
topology: tpu7x:2x2x1
jax: 0.10.0
libtpu: 0.0.40
codegen_flags: <defaults>
</compile_context>

<pallas_src>
import jax
import jax.numpy as jnp
from jax.experimental import pallas as pl
from jax.experimental.pallas import tpu as pltpu


def _hw_budgets():
    """Return (target_input_block_bytes, vmem_limit_ceiling) for this chip."""
    try:
        vmem_cap = pltpu.get_tpu_info().vmem_capacity_bytes
    except Exception:
        vmem_cap = None
    if vmem_cap is not None and vmem_cap <= 64 * 1024 * 1024:
        # v7x-class: 64 MiB VMEM, ~3.2 TB/s HBM -> bigger tiles hide per-step overhead.
        return 6 * 1024 * 1024, 48 * 1024 * 1024
    # v5e / v6e (128 MiB physical VMEM): 4 MiB tiles sit at the roofline knee.
    return 4 * 1024 * 1024, 64 * 1024 * 1024


def _make_tv_kernel(nc, h, w, tb, th, num_h_blocks):
    """Kernel over (tb, th, w) blocks; emits per-block [h_tv, w_tv] partials."""

    def kernel(x_ref, out_ref, carry_ref):
        i = pl.program_id(0)
        x = x_ref[...].astype(jnp.float32)          # one read, one cast (f32 accum)

        slab_ids = jax.lax.broadcasted_iota(jnp.int32, (tb, 1, 1), 0) + i * tb
        slab_ok = slab_ids < nc                     # masks OOB tail slabs (no wrapper pad)

        local_rows = jax.lax.broadcasted_iota(jnp.int32, (1, th, 1), 1)
        col_ids = jax.lax.broadcasted_iota(jnp.int32, (1, 1, w), 2)
        if num_h_blocks > 1:
            j = pl.program_id(1)
            global_rows = local_rows + j * th
        else:
            j = None
            global_rows = local_rows

        # Tile-aligned shifted copies on the XLU (roll) instead of offset-1
        # slices; shift of size-1 == roll by -1 (next element at each position).
        dh = pltpu.roll(x, shift=th - 1, axis=1) - x     # dh[r] = x[r+1] - x[r], wraps at r=th-1
        dw = pltpu.roll(x, shift=w - 1, axis=2) - x      # dw[c] = x[c+1] - x[c], wraps at c=w-1

        dh_ok = slab_ok & (local_rows < th - 1) & (global_rows < h - 1)
        dw_ok = slab_ok & (global_rows < h) & (col_ids < w - 1)

        h_sum = jnp.sum(jnp.where(dh_ok, dh * dh, 0.0))
        w_sum = jnp.sum(jnp.where(dw_ok, dw * dw, 0.0))

        if num_h_blocks > 1:
            # Seam between consecutive H tiles of the same slab:
            # diff(last row of tile j-1, first row of tile j).
            @pl.when(j == 0)
            def _init():
                carry_ref[...] = jnp.zeros_like(carry_ref)

            seam = x[:, 0:1, :] - carry_ref[...]
            seam_ok = slab_ok & (j > 0)
            h_sum = h_sum + jnp.sum(jnp.where(seam_ok, seam * seam, 0.0))
            carry_ref[...] = x[:, th - 1:th, :]          # carry this tile's last row

        out_ref[0, 0] = h_sum
        out_ref[0, 1] = w_sum

    return kernel


def tv_loss(x, weight=1.0):
    """TV loss matching the PyTorch TVLoss.forward semantics.

    x: (N, C, H, W) array. Returns a scalar (float32).
    NOTE: h == 1 or w == 1 divides by zero, exactly like the PyTorch module.
    """
    n, c, h, w = x.shape
    nc = n * c
    x_flat = x.reshape(nc, h, w)

    count_h = c * (h - 1) * w
    count_w = c * h * (w - 1)

    itemsize = jnp.dtype(x.dtype).itemsize
    target_bytes, vmem_ceiling = _hw_budgets()

    slab_bytes = h * w * itemsize
    if slab_bytes <= target_bytes:
        # Fuse many (H, W) slabs per grid step.
        th = h
        tb = max(1, min(nc, target_bytes // max(1, slab_bytes)))
    else:
        # Large image: tile H in multiples of 8 rows; seam handled in-kernel.
        tb = 1
        rows = max(8, (target_bytes // max(1, w * itemsize)) // 8 * 8)
        th = h if rows >= h else rows

    num_slab_blocks = pl.cdiv(nc, tb)
    num_h_blocks = pl.cdiv(h, th)
    total_blocks = num_slab_blocks * num_h_blocks

    # VMEM budget: double-buffered input block + f32 working set, clamped so it
    # never drops below the 32 MiB scoped default nor exceeds the per-gen ceiling.
    in_block_bytes = tb * th * w * itemsize
    f32_block_bytes = tb * th * w * 4
    vmem_needed = 2 * in_block_bytes + 4 * f32_block_bytes + (1 << 20)
    vmem_limit = int(min(vmem_ceiling, max(32 * 1024 * 1024, vmem_needed)))

    flops = 6 * nc * h * w                       # 2 subs + 2 muls + 2 adds per elem
    bytes_accessed = nc * h * w * itemsize + total_blocks * 2 * 4

    kernel = _make_tv_kernel(nc, h, w, tb, th, num_h_blocks)

    partials = pl.pallas_call(
        kernel,
        out_shape=jax.ShapeDtypeStruct((total_blocks, 2), jnp.float32),
        grid_spec=pltpu.PrefetchScalarGridSpec(
            num_scalar_prefetch=0,
            grid=(num_slab_blocks, num_h_blocks),
            in_specs=[pl.BlockSpec((tb, th, w), lambda i, j: (i, j, 0))],
            out_specs=pl.BlockSpec((1, 2),
                                   lambda i, j: (i * num_h_blocks + j, 0),
                                   memory_space=pltpu.SMEM),
            scratch_shapes=[pltpu.VMEM((tb, 1, w), jnp.float32)],   # seam carry
        ),
        compiler_params=pltpu.CompilerParams(
            dimension_semantics=("parallel", "arbitrary"),
            vmem_limit_bytes=vmem_limit),
        cost_estimate=pl.CostEstimate(
            flops=int(flops),
            transcendentals=0,
            bytes_accessed=int(bytes_accessed)),
    )(x_flat)

    h_tv = jnp.sum(partials[:, 0])
    w_tv = jnp.sum(partials[:, 1])
    return weight * (h_tv / count_h + w_tv / count_w) / n


def tv_loss_ref(x, weight=1.0):
    """Pure-JAX reference (mirrors the PyTorch module)."""
    n, c, h, w = x.shape
    x = x.astype(jnp.float32)
    count_h = c * (h - 1) * w
    count_w = c * h * (w - 1)
    h_tv = jnp.sum((x[:, :, 1:, :] - x[:, :, :-1, :]) ** 2)
    w_tv = jnp.sum((x[:, :, :, 1:] - x[:, :, :, :-1]) ** 2)
    return weight * (h_tv / count_h + w_tv / count_w) / n


if __name__ == "__main__":
    key = jax.random.PRNGKey(0)
    x = jax.random.normal(key, (2, 4, 16, 16), dtype=jnp.float32)

    out = tv_loss(x, weight=1.0)
    out = jax.block_until_ready(out)

    ref = tv_loss_ref(x, weight=1.0)
    assert jnp.allclose(out, ref, rtol=1e-5, atol=1e-5), (out, ref)
    print("KERNEL_OK")
</pallas_src>

<mosaic_0001>
module attributes {stable_mosaic.version = 11 : i64} {
  func.func @kernel(%arg0: i32, %arg1: i32, %arg2: memref<8x16x16xf32, #tpu.memory_space<vmem>>, %arg3: memref<1x2xf32, #tpu.memory_space<smem>>, %arg4: memref<8x1x16xf32, #tpu.memory_space<vmem>>) attributes {dimension_semantics = [#tpu.dimension_semantics<parallel>, #tpu.dimension_semantics<arbitrary>], iteration_bounds = array<i64: 1, 1>, scalar_prefetch = 0 : i64, scratch_operands = 1 : i64, tpu.core_type = #tpu.core_type<tc>, window_params = [{transform_indices = @transform_0, window_bounds = array<i64: 8, 16, 16>}, {transform_indices = @transform_1, window_bounds = array<i64: 1, 2>}]} {
    %c0 = arith.constant 0 : index
    %c0_0 = arith.constant 0 : index
    %c0_1 = arith.constant 0 : index
    %0 = vector.load %arg2[%c0, %c0_0, %c0_1] : memref<8x16x16xf32, #tpu.memory_space<vmem>>, vector<8x16x16xf32>
    %1 = tpu.iota {dimensions = array<i32: 0>} : vector<8x1x1xi32>
    %c8_i32 = arith.constant 8 : i32
    %2 = arith.muli %arg0, %c8_i32 : i32
    %3 = vector.broadcast %2 : i32 to vector<8x1x1xi32>
    %4 = arith.addi %1, %3 : vector<8x1x1xi32>
    %c8_i32_2 = arith.constant 8 : i32
    %5 = vector.broadcast %c8_i32_2 : i32 to vector<8x1x1xi32>
    %6 = arith.cmpi slt, %4, %5 : vector<8x1x1xi32>
    %7 = tpu.iota {dimensions = array<i32: 1>} : vector<1x16x1xi32>
    %8 = tpu.iota {dimensions = array<i32: 2>} : vector<1x1x16xi32>
    %c15_i32 = arith.constant 15 : i32
    %9 = tpu.dynamic_rotate %0 by %c15_i32 dim 1 : vector<8x16x16xf32>, i32 -> vector<8x16x16xf32>
    %10 = arith.subf %9, %0 : vector<8x16x16xf32>
    %c15_i32_3 = arith.constant 15 : i32
    %11 = tpu.dynamic_rotate %0 by %c15_i32_3 dim 2 : vector<8x16x16xf32>, i32 -> vector<8x16x16xf32>
    %12 = arith.subf %11, %0 : vector<8x16x16xf32>
    %c15_i32_4 = arith.constant 15 : i32
    %13 = vector.broadcast %c15_i32_4 : i32 to vector<1x16x1xi32>
    %14 = arith.cmpi slt, %7, %13 : vector<1x16x1xi32>
    %15 = vector.broadcast %6 : vector<8x1x1xi1> to vector<8x16x1xi1>
    %16 = vector.broadcast %14 : vector<1x16x1xi1> to vector<8x16x1xi1>
    %17 = arith.andi %15, %16 : vector<8x16x1xi1>
    %c15_i32_5 = arith.constant 15 : i32
    %18 = vector.broadcast %c15_i32_5 : i32 to vector<1x16x1xi32>
    %19 = arith.cmpi slt, %7, %18 : vector<1x16x1xi32>
    %20 = vector.broadcast %19 : vector<1x16x1xi1> to vector<8x16x1xi1>
    %21 = arith.andi %17, %20 : vector<8x16x1xi1>
    %c16_i32 = arith.constant 16 : i32
    %22 = vector.broadcast %c16_i32 : i32 to vector<1x16x1xi32>
    %23 = arith.cmpi slt, %7, %22 : vector<1x16x1xi32>
    %24 = vector.broadcast %6 : vector<8x1x1xi1> to vector<8x16x1xi1>
    %25 = vector.broadcast %23 : vector<1x16x1xi1> to vector<8x16x1xi1>
    %26 = arith.andi %24, %25 : vector<8x16x1xi1>
    %c15_i32_6 = arith.constant 15 : i32
    %27 = vector.broadcast %c15_i32_6 : i32 to vector<1x1x16xi32>
    %28 = arith.cmpi slt, %8, %27 : vector<1x1x16xi32>
    %29 = vector.broadcast %26 : vector<8x16x1xi1> to vector<8x16x16xi1>
    %30 = vector.broadcast %28 : vector<1x1x16xi1> to vector<8x16x16xi1>
    %31 = arith.andi %29, %30 : vector<8x16x16xi1>
    %32 = arith.mulf %10, %10 : vector<8x16x16xf32>
    %cst = arith.constant 0.000000e+00 : f32
    %33 = vector.shape_cast %21 : vector<8x16x1xi1> to vector<8x16x1xi1>
    %34 = vector.broadcast %33 : vector<8x16x1xi1> to vector<8x16x16xi1>
    %35 = vector.broadcast %cst : f32 to vector<8x16x16xf32>
    %36 = arith.select %34, %32, %35 : vector<8x16x16xi1>, vector<8x16x16xf32>
    %37 = vector.shape_cast %36 : vector<8x16x16xf32> to vector<1x8x16x16xf32>
    %cst_7 = arith.constant dense<0.000000e+00> : vector<1xf32>
    %38 = vector.multi_reduction <add>, %37, %cst_7 [1, 2, 3] : vector<1x8x16x16xf32> to vector<1xf32>
    %39 = vector.shape_cast %38 : vector<1xf32> to vector<1x1x1x1xf32>
    %40 = vector.extract %39[0, 0, 0, 0] : f32 from vector<1x1x1x1xf32>
    %41 = arith.mulf %12, %12 : vector<8x16x16xf32>
    %cst_8 = arith.constant 0.000000e+00 : f32
    %42 = vector.broadcast %cst_8 : f32 to vector<8x16x16xf32>
    %43 = arith.select %31, %41, %42 : vector<8x16x16xi1>, vector<8x16x16xf32>
    %44 = vector.shape_cast %43 : vector<8x16x16xf32> to vector<1x8x16x16xf32>
    %cst_9 = arith.constant dense<0.000000e+00> : vector<1xf32>
    %45 = vector.multi_reduction <add>, %44, %cst_9 [1, 2, 3] : vector<1x8x16x16xf32> to vector<1xf32>
    %46 = vector.shape_cast %45 : vector<1xf32> to vector<1x1x1x1xf32>
    %47 = vector.extract %46[0, 0, 0, 0] : f32 from vector<1x1x1x1xf32>
    %c0_10 = arith.constant 0 : index
    %c0_11 = arith.constant 0 : index
    %48 = memref.load %arg3[%c0_10, %c0_11] : memref<1x2xf32, #tpu.memory_space<smem>>
    memref.store %40, %arg3[%c0_10, %c0_11] : memref<1x2xf32, #tpu.memory_space<smem>>
    %c0_12 = arith.constant 0 : index
    %c1 = arith.constant 1 : index
    %49 = memref.load %arg3[%c0_12, %c1] : memref<1x2xf32, #tpu.memory_space<smem>>
    memref.store %47, %arg3[%c0_12, %c1] : memref<1x2xf32, #tpu.memory_space<smem>>
    return
  }
  func.func @transform_0(%arg0: i32, %arg1: i32) -> (i32, i32, i32) {
    %c0_i32 = arith.constant 0 : i32
    %c0_i32_0 = arith.constant 0 : i32
    return %arg0, %arg1, %c0_i32 : i32, i32, i32
  }
  func.func @transform_1(%arg0: i32, %arg1: i32) -> (i32, i32) {
    %c1_i32 = arith.constant 1 : i32
    %0 = arith.muli %arg0, %c1_i32 : i32
    %1 = arith.addi %0, %arg1 : i32
    %c0_i32 = arith.constant 0 : i32
    %c0_i32_0 = arith.constant 0 : i32
    return %1, %c0_i32 : i32, i32
  }
}

</mosaic_0001>

<llo_original>
// kernel: tpu_custom_call.1
$region0: #{tpu_custom_call.1}
  #allocation0 [shape = 'u32[]', space=smem, size = 0x4, offset = 0x4, fixed_abs, tag = 'smem constant byte address 0x4 - core index']
  #allocation1 [shape = 'u32[144,128]{1,0:T(1,128)}', space=vmem, size = 0x12000, scoped, tag = 'internal scratch']
  #allocation2 [shape = 'f32[8,1,16]{2,1,0:T(1,128)}', space=vmem, size = 0x1000, scoped, tag = 'scratch operand']
  %s0 = inlined_call_operand.hbm [shape: f32[8,16,16], index: 0, kind: input, shape index: {}]
  %s1 = inlined_call_operand.hbm [shape: f32[1,2], index: 1, kind: output, shape index: {}]
  %s2 = sld [smem:[#allocation0]]
  $region18: #{tpu_custom_call.1} parent=0
    _
  %s4 = ssub.s32 1, %s2
  %s5 = scalar_select 0, %s4, %s2
  $region1: #{tpu_custom_call.1} parent=0
    #allocation3 [shape = 'u8[65536]{0}', space=vmem, size = 0x10000, scoped, tag = 'input window, operand 0, single buffered']
    #allocation4 [shape = 's32[1]{0}', space=sflag, size = 0x4, scoped, tag = 'scoped memory for tpu_custom_call.1']
    #allocation5 [shape = 's32[1]{0}', space=sflag, size = 0x4, scoped, tag = 'scoped memory for tpu_custom_call.1']
    #allocation6 [shape = 'u8[512]{0}', space=smem, size = 0x200, scoped, tag = 'output window, operand 0, single buffered']
    %6 = vsyncpa [#allocation4], 0
    %7 = vsyncpa [#allocation5], 0
    // Predicated region
    $region2: #{tpu_custom_call.1} parent=1 // pred_check
      _
    $region3: #{tpu_custom_call.1} parent=1 // pred_check_branch
      %9 = sbr.rel (0) target = $region5
    $region4: #{tpu_custom_call.1} parent=1 // pred_region
      %s11 = ssub.s32 2048, 2048
      %12 = vsyncadd [#allocation4], %s11
      %s13 = sshll.u32 [#allocation3], 4
      %s14 = int_to_ptr.vmem [resolvable:$true] %s13
      %19 = dma.hbm_to_vmem [thread:$0]  %s0, 2048, %s14, [#allocation4], 128, 128, 8
    $region5: #{tpu_custom_call.1} parent=1 // pred_fallthru
      _
    // Predicated region
    $region6: #{tpu_custom_call.1} parent=1 // pred_check
      _
    $region7: #{tpu_custom_call.1} parent=1 // pred_check_branch
      %21 = sbr.rel (0) target = $region9
    $region8: #{tpu_custom_call.1} parent=1 // pred_region
      %22 = dma.done [#allocation4], 2048
    $region9: #{tpu_custom_call.1} parent=1 // pred_fallthru
      _
    %s23 = sadd.s32 0, 0
    %v24 = vld [vmem:[#allocation3] sm:$0xff]
    %v25 = vld [vmem:[#allocation3 + $0x8] sm:$0xff]
    %v26 = vld [vmem:[#allocation3 + $0x10] sm:$0xff]
    %v27 = vld [vmem:[#allocation3 + $0x18] sm:$0xff]
    %v28 = vld [vmem:[#allocation3 + $0x20] sm:$0xff]
    %v29 = vld [vmem:[#allocation3 + $0x28] sm:$0xff]
    %v30 = vld [vmem:[#allocation3 + $0x30] sm:$0xff]
    %v31 = vld [vmem:[#allocation3 + $0x38] sm:$0xff]
    %v32 = vld [vmem:[#allocation3 + $0x40] sm:$0xff]
    %v33 = vld [vmem:[#allocation3 + $0x48] sm:$0xff]
    %v34 = vld [vmem:[#allocation3 + $0x50] sm:$0xff]
    %v35 = vld [vmem:[#allocation3 + $0x58] sm:$0xff]
    %v36 = vld [vmem:[#allocation3 + $0x60] sm:$0xff]
    %v37 = vld [vmem:[#allocation3 + $0x68] sm:$0xff]
    %v38 = vld [vmem:[#allocation3 + $0x70] sm:$0xff]
    %v39 = vld [vmem:[#allocation3 + $0x78] sm:$0xff]
    %s40 = smul.u32 0, 8
    %v41 = vstv %s40
    %v42 = vadd.s32 %v41, 1
    %v43 = vadd.s32 %v41, 2
    %v44 = vadd.s32 %v41, 3
    %v45 = vadd.s32 %v41, 4
    %v46 = vadd.s32 %v41, 5
    %v47 = vadd.s32 %v41, 6
    %v48 = vadd.s32 %v41, 7
    %vm49 = vcmp.lt.s32.totalorder %v41, 8
    %vm50 = vcmp.lt.s32.totalorder %v42, 8
    %vm51 = vcmp.lt.s32.totalorder %v43, 8
    %vm52 = vcmp.lt.s32.totalorder %v44, 8
    %vm53 = vcmp.lt.s32.totalorder %v45, 8
    %vm54 = vcmp.lt.s32.totalorder %v46, 8
    %vm55 = vcmp.lt.s32.totalorder %v47, 8
    %vm56 = vcmp.lt.s32.totalorder %v48, 8
    %v57 = vlaneseq
    %v58 = vshrl.u32 %v57, 7
    %v59 = vadd.s32 %v58, 8
    %v60 = vlaneseq
    %v61 = vand.u32 %v60, 127
    %v62 = vrot.slane %v24, 1
    %v63 = vrot.slane %v26, 1
    %v64 = vrot.slane %v28, 1
    %v65 = vrot.slane %v30, 1
    %v66 = vrot.slane %v32, 1
    %v67 = vrot.slane %v34, 1
    %v68 = vrot.slane %v36, 1
    %v69 = vrot.slane %v38, 1
    %v70 = vrot.slane %v25, 1
    %v71 = vrot.slane %v27, 1
    %v72 = vrot.slane %v29, 1
    %v73 = vrot.slane %v31, 1
    %v74 = vrot.slane %v33, 1
    %v75 = vrot.slane %v35, 1
    %v76 = vrot.slane %v37, 1
    %v77 = vrot.slane %v39, 1
    %vm78 = vcmp.lt.s32.totalorder %v58, 7
    %v79 = vsel %vm78, %v62, %v70
    %v80 = vsel %vm78, %v63, %v71
    %v81 = vsel %vm78, %v64, %v72
    %v82 = vsel %vm78, %v65, %v73
    %v83 = vsel %vm78, %v66, %v74
    %v84 = vsel %vm78, %v67, %v75
    %v85 = vsel %vm78, %v68, %v76
    %v86 = vsel %vm78, %v69, %v77
    %v87 = vsel %vm78, %v70, %v62
    %v88 = vsel %vm78, %v71, %v63
    %v89 = vsel %vm78, %v72, %v64
    %v90 = vsel %vm78, %v73, %v65
    %v91 = vsel %vm78, %v74, %v66
    %v92 = vsel %vm78, %v75, %v67
    %v93 = vsel %vm78, %v76, %v68
    %v94 = vsel %vm78, %v77, %v69
    %v95 = vsub.f32 %v79, %v24
    %v96 = vsub.f32 %v87, %v25
    %v97 = vsub.f32 %v80, %v26
    %v98 = vsub.f32 %v88, %v27
    %v99 = vsub.f32 %v81, %v28
    %v100 = vsub.f32 %v89, %v29
    %v101 = vsub.f32 %v82, %v30
    %v102 = vsub.f32 %v90, %v31
    %v103 = vsub.f32 %v83, %v32
    %v104 = vsub.f32 %v91, %v33
    %v105 = vsub.f32 %v84, %v34
    %v106 = vsub.f32 %v92, %v35
    %v107 = vsub.f32 %v85, %v36
    %v108 = vsub.f32 %v93, %v37
    %v109 = vsub.f32 %v86, %v38
    %v110 = vsub.f32 %v94, %v39
    %vm111 = vcmask 1047680
    %112 = vrot.lane.b32.xlu0 %v24, 16
    %v113 = vpop.permute.xlu0 %112
    %v114 = vsel %vm111, %v113, %v24
    %115 = vrot.lane.b32.xlu0 %v25, 16
    %v116 = vpop.permute.xlu0 %115
    %v117 = vsel %vm111, %v116, %v25
    %118 = vrot.lane.b32.xlu0 %v26, 16
    %v119 = vpop.permute.xlu0 %118
    %v120 = vsel %vm111, %v119, %v26
    %121 = vrot.lane.b32.xlu0 %v27, 16
    %v122 = vpop.permute.xlu0 %121
    %v123 = vsel %vm111, %v122, %v27
    %124 = vrot.lane.b32.xlu0 %v28, 16
    %v125 = vpop.permute.xlu0 %124
    %v126 = vsel %vm111, %v125, %v28
    %127 = vrot.lane.b32.xlu0 %v29, 16
    %v128 = vpop.permute.xlu0 %127
    %v129 = vsel %vm111, %v128, %v29
    %130 = vrot.lane.b32.xlu0 %v30, 16
    %v131 = vpop.permute.xlu0 %130
    %v132 = vsel %vm111, %v131, %v30
    %133 = vrot.lane.b32.xlu0 %v31, 16
    %v134 = vpop.permute.xlu0 %133
    %v135 = vsel %vm111, %v134, %v31
    %136 = vrot.lane.b32.xlu0 %v32, 16
    %v137 = vpop.permute.xlu0 %136
    %v138 = vsel %vm111, %v137, %v32
    %139 = vrot.lane.b32.xlu0 %v33, 16
    %v140 = vpop.permute.xlu0 %139
    %v141 = vsel %vm111, %v140, %v33
    %142 = vrot.lane.b32.xlu0 %v34, 16
    %v143 = vpop.permute.xlu0 %142
    %v144 = vsel %vm111, %v143, %v34
    %145 = vrot.lane.b32.xlu0 %v35, 16
    %v146 = vpop.permute.xlu0 %145
    %v147 = vsel %vm111, %v146, %v35
    %148 = vrot.lane.b32.xlu0 %v36, 16
    %v149 = vpop.permute.xlu0 %148
    %v150 = vsel %vm111, %v149, %v36
    %151 = vrot.lane.b32.xlu0 %v37, 16
    %v152 = vpop.permute.xlu0 %151
    %v153 = vsel %vm111, %v152, %v37
    %154 = vrot.lane.b32.xlu0 %v38, 16
    %v155 = vpop.permute.xlu0 %154
    %v156 = vsel %vm111, %v155, %v38
    %157 = vrot.lane.b32.xlu0 %v39, 16
    %v158 = vpop.permute.xlu0 %157
    %v159 = vsel %vm111, %v158, %v39
    %160 = vrot.lane.b32.xlu0 %v114, 16
    %v161 = vpop.permute.xlu0 %160
    %162 = vrot.lane.b32.xlu0 %v117, 16
    %v163 = vpop.permute.xlu0 %162
    %164 = vrot.lane.b32.xlu0 %v120, 16
    %v165 = vpop.permute.xlu0 %164
    %166 = vrot.lane.b32.xlu0 %v123, 16
    %v167 = vpop.permute.xlu0 %166
    %168 = vrot.lane.b32.xlu0 %v126, 16
    %v169 = vpop.permute.xlu0 %168
    %170 = vrot.lane.b32.xlu0 %v129, 16
    %v171 = vpop.permute.xlu0 %170
    %172 = vrot.lane.b32.xlu0 %v132, 16
    %v173 = vpop.permute.xlu0 %172
    %174 = vrot.lane.b32.xlu0 %v135, 16
    %v175 = vpop.permute.xlu0 %174
    %176 = vrot.lane.b32.xlu0 %v138, 16
    %v177 = vpop.permute.xlu0 %176
    %178 = vrot.lane.b32.xlu0 %v141, 16
    %v179 = vpop.permute.xlu0 %178
    %180 = vrot.lane.b32.xlu0 %v144, 16
    %v181 = vpop.permute.xlu0 %180
    %182 = vrot.lane.b32.xlu0 %v147, 16
    %v183 = vpop.permute.xlu0 %182
    %184 = vrot.lane.b32.xlu0 %v150, 16
    %v185 = vpop.permute.xlu0 %184
    %186 = vrot.lane.b32.xlu0 %v153, 16
    %v187 = vpop.permute.xlu0 %186
    %188 = vrot.lane.b32.xlu0 %v156, 16
    %v189 = vpop.permute.xlu0 %188
    %190 = vrot.lane.b32.xlu0 %v159, 16
    %v191 = vpop.permute.xlu0 %190
    %v192 = vsel %vm111, %v161, %v24
    %v193 = vsel %vm111, %v163, %v25
    %v194 = vsel %vm111, %v165, %v26
    %v195 = vsel %vm111, %v167, %v27
    %v196 = vsel %vm111, %v169, %v28
    %v197 = vsel %vm111, %v171, %v29
    %v198 = vsel %vm111, %v173, %v30
    %v199 = vsel %vm111, %v175, %v31
    %v200 = vsel %vm111, %v177, %v32
    %v201 = vsel %vm111, %v179, %v33
    %v202 = vsel %vm111, %v181, %v34
    %v203 = vsel %vm111, %v183, %v35
    %v204 = vsel %vm111, %v185, %v36
    %v205 = vsel %vm111, %v187, %v37
    %v206 = vsel %vm111, %v189, %v38
    %v207 = vsel %vm111, %v191, %v39
    %224 = vrot.lane.b32.xlu0 %v24, 1
    %v225 = vpop.permute.xlu0 %224
    %226 = vrot.lane.b32.xlu0 %v25, 1
    %v227 = vpop.permute.xlu0 %226
    %228 = vrot.lane.b32.xlu0 %v26, 1
    %v229 = vpop.permute.xlu0 %228
    %230 = vrot.lane.b32.xlu0 %v27, 1
    %v231 = vpop.permute.xlu0 %230
    %232 = vrot.lane.b32.xlu0 %v28, 1
    %v233 = vpop.permute.xlu0 %232
    %234 = vrot.lane.b32.xlu0 %v29, 1
    %v235 = vpop.permute.xlu0 %234
    %236 = vrot.lane.b32.xlu0 %v30, 1
    %v237 = vpop.permute.xlu0 %236
    %238 = vrot.lane.b32.xlu0 %v31, 1
    %v239 = vpop.permute.xlu0 %238
    %240 = vrot.lane.b32.xlu0 %v32, 1
    %v241 = vpop.permute.xlu0 %240
    %242 = vrot.lane.b32.xlu0 %v33, 1
    %v243 = vpop.permute.xlu0 %242
    %244 = vrot.lane.b32.xlu0 %v34, 1
    %v245 = vpop.permute.xlu0 %244
    %246 = vrot.lane.b32.xlu0 %v35, 1
    %v247 = vpop.permute.xlu0 %246
    %248 = vrot.lane.b32.xlu0 %v36, 1
    %v249 = vpop.permute.xlu0 %248
    %250 = vrot.lane.b32.xlu0 %v37, 1
    %v251 = vpop.permute.xlu0 %250
    %252 = vrot.lane.b32.xlu0 %v38, 1
    %v253 = vpop.permute.xlu0 %252
    %254 = vrot.lane.b32.xlu0 %v39, 1
    %v255 = vpop.permute.xlu0 %254
    %v272 = vsub.f32 %v192, %v225
    %v273 = vsub.f32 %v193, %v227
    %v274 = vsub.f32 %v194, %v229
    %v275 = vsub.f32 %v195, %v231
    %v276 = vsub.f32 %v196, %v233
    %v277 = vsub.f32 %v197, %v235
    %v278 = vsub.f32 %v198, %v237
    %v279 = vsub.f32 %v199, %v239
    %v280 = vsub.f32 %v200, %v241
    %v281 = vsub.f32 %v201, %v243
    %v282 = vsub.f32 %v202, %v245
    %v283 = vsub.f32 %v203, %v247
    %v284 = vsub.f32 %v204, %v249
    %v285 = vsub.f32 %v205, %v251
    %v286 = vsub.f32 %v206, %v253
    %v287 = vsub.f32 %v207, %v255
    %vm288 = vcmp.lt.s32.totalorder %v58, 15
    %vm289 = vcmp.lt.s32.totalorder %v59, 15
    %v290 = vsel %vm49, 1, 0
    %v291 = vsel %vm50, 1, 0
    %v292 = vsel %vm51, 1, 0
    %v293 = vsel %vm52, 1, 0
    %v294 = vsel %vm53, 1, 0
    %v295 = vsel %vm54, 1, 0
    %v296 = vsel %vm55, 1, 0
    %v297 = vsel %vm56, 1, 0
    %vm298 = vcmp.eq.s32.totalorder %v290, 1
    %vm299 = vcmp.eq.s32.totalorder %v291, 1
    %vm300 = vcmp.eq.s32.totalorder %v292, 1
    %vm301 = vcmp.eq.s32.totalorder %v293, 1
    %vm302 = vcmp.eq.s32.totalorder %v294, 1
    %vm303 = vcmp.eq.s32.totalorder %v295, 1
    %vm304 = vcmp.eq.s32.totalorder %v296, 1
    %vm305 = vcmp.eq.s32.totalorder %v297, 1
    %v306 = vsel %vm288, 1, 0
    %v307 = vsel %vm289, 1, 0
    %vm308 = vcmp.eq.s32.totalorder %v306, 1
    %vm309 = vcmp.eq.s32.totalorder %v307, 1
    %vm310 = vmand %vm298, %vm308
    %vm311 = vmand %vm298, %vm309
    %vm312 = vmand %vm299, %vm308
    %vm313 = vmand %vm299, %vm309
    %vm314 = vmand %vm300, %vm308
    %vm315 = vmand %vm300, %vm309
    %vm316 = vmand %vm301, %vm308
    %vm317 = vmand %vm301, %vm309
    %vm318 = vmand %vm302, %vm308
    %vm319 = vmand %vm302, %vm309
    %vm320 = vmand %vm303, %vm308
    %vm321 = vmand %vm303, %vm309
    %vm322 = vmand %vm304, %vm308
    %vm323 = vmand %vm304, %vm309
    %vm324 = vmand %vm305, %vm308
    %vm325 = vmand %vm305, %vm309
    %vm326 = vcmp.lt.s32.totalorder %v58, 16
    %vm327 = vcmp.lt.s32.totalorder %v59, 16
    %v328 = vsel %vm326, 1, 0
    %v329 = vsel %vm327, 1, 0
    %vm330 = vcmp.eq.s32.totalorder %v328, 1
    %vm331 = vcmp.eq.s32.totalorder %v329, 1
    %vm332 = vmand %vm298, %vm330
    %vm333 = vmand %vm298, %vm331
    %vm334 = vmand %vm299, %vm330
    %vm335 = vmand %vm299, %vm331
    %vm336 = vmand %vm300, %vm330
    %vm337 = vmand %vm300, %vm331
    %vm338 = vmand %vm301, %vm330
    %vm339 = vmand %vm301, %vm331
    %vm340 = vmand %vm302, %vm330
    %vm341 = vmand %vm302, %vm331
    %vm342 = vmand %vm303, %vm330
    %vm343 = vmand %vm303, %vm331
    %vm344 = vmand %vm304, %vm330
    %vm345 = vmand %vm304, %vm331
    %vm346 = vmand %vm305, %vm330
    %vm347 = vmand %vm305, %vm331
    %vm348 = vcmp.lt.s32.totalorder %v61, 15
    %v349 = vsel %vm332, 1, 0
    %v350 = vsel %vm333, 1, 0
    %v351 = vsel %vm334, 1, 0
    %v352 = vsel %vm335, 1, 0
    %v353 = vsel %vm336, 1, 0
    %v354 = vsel %vm337, 1, 0
    %v355 = vsel %vm338, 1, 0
    %v356 = vsel %vm339, 1, 0
    %v357 = vsel %vm340, 1, 0
    %v358 = vsel %vm341, 1, 0
    %v359 = vsel %vm342, 1, 0
    %v360 = vsel %vm343, 1, 0
    %v361 = vsel %vm344, 1, 0
    %v362 = vsel %vm345, 1, 0
    %v363 = vsel %vm346, 1, 0
    %v364 = vsel %vm347, 1, 0
    %vm365 = vcmp.eq.s32.totalorder %v349, 1
    %vm366 = vcmp.eq.s32.totalorder %v350, 1
    %vm367 = vcmp.eq.s32.totalorder %v351, 1
    %vm368 = vcmp.eq.s32.totalorder %v352, 1
    %vm369 = vcmp.eq.s32.totalorder %v353, 1
    %vm370 = vcmp.eq.s32.totalorder %v354, 1
    %vm371 = vcmp.eq.s32.totalorder %v355, 1
    %vm372 = vcmp.eq.s32.totalorder %v356, 1
    %vm373 = vcmp.eq.s32.totalorder %v357, 1
    %vm374 = vcmp.eq.s32.totalorder %v358, 1
    %vm375 = vcmp.eq.s32.totalorder %v359, 1
    %vm376 = vcmp.eq.s32.totalorder %v360, 1
    %vm377 = vcmp.eq.s32.totalorder %v361, 1
    %vm378 = vcmp.eq.s32.totalorder %v362, 1
    %vm379 = vcmp.eq.s32.totalorder %v363, 1
    %vm380 = vcmp.eq.s32.totalorder %v364, 1
    %v381 = vsel %vm348, 1, 0
    %vm382 = vcmp.eq.s32.totalorder %v381, 1
    %vm383 = vmand %vm365, %vm382
    %vm384 = vmand %vm366, %vm382
    %vm385 = vmand %vm367, %vm382
    %vm386 = vmand %vm368, %vm382
    %vm387 = vmand %vm369, %vm382
    %vm388 = vmand %vm370, %vm382
    %vm389 = vmand %vm371, %vm382
    %vm390 = vmand %vm372, %vm382
    %vm391 = vmand %vm373, %vm382
    %vm392 = vmand %vm374, %vm382
    %vm393 = vmand %vm375, %vm382
    %vm394 = vmand %vm376, %vm382
    %vm395 = vmand %vm377, %vm382
    %vm396 = vmand %vm378, %vm382
    %vm397 = vmand %vm379, %vm382
    %vm398 = vmand %vm380, %vm382
    %v399 = vmul.f32 %v95, %v95
    %v400 = vmul.f32 %v96, %v96
    %v401 = vmul.f32 %v97, %v97
    %v402 = vmul.f32 %v98, %v98
    %v403 = vmul.f32 %v99, %v99
    %v404 = vmul.f32 %v100, %v100
    %v405 = vmul.f32 %v101, %v101
    %v406 = vmul.f32 %v102, %v102
    %v407 = vmul.f32 %v103, %v103
    %v408 = vmul.f32 %v104, %v104
    %v409 = vmul.f32 %v105, %v105
    %v410 = vmul.f32 %v106, %v106
    %v411 = vmul.f32 %v107, %v107
    %v412 = vmul.f32 %v108, %v108
    %v413 = vmul.f32 %v109, %v109
    %v414 = vmul.f32 %v110, %v110
    %v415 = vsel %vm310, 1, 0
    %v416 = vsel %vm311, 1, 0
    %v417 = vsel %vm312, 1, 0
    %v418 = vsel %vm313, 1, 0
    %v419 = vsel %vm314, 1, 0
    %v420 = vsel %vm315, 1, 0
    %v421 = vsel %vm316, 1, 0
    %v422 = vsel %vm317, 1, 0
    %v423 = vsel %vm318, 1, 0
    %v424 = vsel %vm319, 1, 0
    %v425 = vsel %vm320, 1, 0
    %v426 = vsel %vm321, 1, 0
    %v427 = vsel %vm322, 1, 0
    %v428 = vsel %vm323, 1, 0
    %v429 = vsel %vm324, 1, 0
    %v430 = vsel %vm325, 1, 0
    %vm431 = vcmp.eq.s32.totalorder %v415, 1
    %vm432 = vcmp.eq.s32.totalorder %v416, 1
    %vm433 = vcmp.eq.s32.totalorder %v417, 1
    %vm434 = vcmp.eq.s32.totalorder %v418, 1
    %vm435 = vcmp.eq.s32.totalorder %v419, 1
    %vm436 = vcmp.eq.s32.totalorder %v420, 1
    %vm437 = vcmp.eq.s32.totalorder %v421, 1
    %vm438 = vcmp.eq.s32.totalorder %v422, 1
    %vm439 = vcmp.eq.s32.totalorder %v423, 1
    %vm440 = vcmp.eq.s32.totalorder %v424, 1
    %vm441 = vcmp.eq.s32.totalorder %v425, 1
    %vm442 = vcmp.eq.s32.totalorder %v426, 1
    %vm443 = vcmp.eq.s32.totalorder %v427, 1
    %vm444 = vcmp.eq.s32.totalorder %v428, 1
    %vm445 = vcmp.eq.s32.totalorder %v429, 1
    %vm446 = vcmp.eq.s32.totalorder %v430, 1
    %v447 = vsel %vm431, %v399, 0.0
    %v448 = vsel %vm432, %v400, 0.0
    %v449 = vsel %vm433, %v401, 0.0
    %v450 = vsel %vm434, %v402, 0.0
    %v451 = vsel %vm435, %v403, 0.0
    %v452 = vsel %vm436, %v404, 0.0
    %v453 = vsel %vm437, %v405, 0.0
    %v454 = vsel %vm438, %v406, 0.0
    %v455 = vsel %vm439, %v407, 0.0
    %v456 = vsel %vm440, %v408, 0.0
    %v457 = vsel %vm441, %v409, 0.0
    %v458 = vsel %vm442, %v410, 0.0
    %v459 = vsel %vm443, %v411, 0.0
    %v460 = vsel %vm444, %v412, 0.0
    %v461 = vsel %vm445, %v413, 0.0
    %v462 = vsel %vm446, %v414, 0.0
    %vm463 = vcmask 130048
    %v464 = vsel %vm463, %v447, 0.0
    %v465 = vsel %vm463, %v448, 0.0
    %v466 = vadd.f32 %v464, %v465
    %v467 = vsel %vm463, %v449, 0.0
    %v468 = vadd.f32 %v466, %v467
    %v469 = vsel %vm463, %v450, 0.0
    %v470 = vadd.f32 %v468, %v469
    %v471 = vsel %vm463, %v451, 0.0
    %v472 = vadd.f32 %v470, %v471
    %v473 = vsel %vm463, %v452, 0.0
    %v474 = vadd.f32 %v472, %v473
    %v475 = vsel %vm463, %v453, 0.0
    %v476 = vadd.f32 %v474, %v475
    %v477 = vsel %vm463, %v454, 0.0
    %v478 = vadd.f32 %v476, %v477
    %v479 = vsel %vm463, %v455, 0.0
    %v480 = vadd.f32 %v478, %v479
    %v481 = vsel %vm463, %v456, 0.0
    %v482 = vadd.f32 %v480, %v481
    %v483 = vsel %vm463, %v457, 0.0
    %v484 = vadd.f32 %v482, %v483
    %v485 = vsel %vm463, %v458, 0.0
    %v486 = vadd.f32 %v484, %v485
    %v487 = vsel %vm463, %v459, 0.0
    %v488 = vadd.f32 %v486, %v487
    %v489 = vsel %vm463, %v460, 0.0
    %v490 = vadd.f32 %v488, %v489
    %v491 = vsel %vm463, %v461, 0.0
    %v492 = vadd.f32 %v490, %v491
    %v493 = vsel %vm463, %v462, 0.0
    %v494 = vadd.f32 %v492, %v493
    %495 = vadd.xlane.f32.xlu0 %v494
    %v496 = vpop.xlane.xlu0 %495
    %v497 = vrot.slane %v496, 4
    %v498 = vadd.f32 %v496, %v497
    %v499 = vrot.slane %v498, 2
    %v500 = vadd.f32 %v498, %v499
    %v501 = vrot.slane %v500, 1
    %v502 = vadd.f32 %v500, %v501
    %s503 = vtos %v502
    %v504 = vmul.f32 %v272, %v272
    %v505 = vmul.f32 %v273, %v273
    %v506 = vmul.f32 %v274, %v274
    %v507 = vmul.f32 %v275, %v275
    %v508 = vmul.f32 %v276, %v276
    %v509 = vmul.f32 %v277, %v277
    %v510 = vmul.f32 %v278, %v278
    %v511 = vmul.f32 %v279, %v279
    %v512 = vmul.f32 %v280, %v280
    %v513 = vmul.f32 %v281, %v281
    %v514 = vmul.f32 %v282, %v282
    %v515 = vmul.f32 %v283, %v283
    %v516 = vmul.f32 %v284, %v284
    %v517 = vmul.f32 %v285, %v285
    %v518 = vmul.f32 %v286, %v286
    %v519 = vmul.f32 %v287, %v287
    %536 = vrot.lane.b32.xlu0 %v504, 127
    %v537 = vpop.permute.xlu0 %536
    %538 = vrot.lane.b32.xlu0 %v505, 127
    %v539 = vpop.permute.xlu0 %538
    %540 = vrot.lane.b32.xlu0 %v506, 127
    %v541 = vpop.permute.xlu0 %540
    %542 = vrot.lane.b32.xlu0 %v507, 127
    %v543 = vpop.permute.xlu0 %542
    %544 = vrot.lane.b32.xlu0 %v508, 127
    %v545 = vpop.permute.xlu0 %544
    %546 = vrot.lane.b32.xlu0 %v509, 127
    %v547 = vpop.permute.xlu0 %546
    %548 = vrot.lane.b32.xlu0 %v510, 127
    %v549 = vpop.permute.xlu0 %548
    %550 = vrot.lane.b32.xlu0 %v511, 127
    %v551 = vpop.permute.xlu0 %550
    %552 = vrot.lane.b32.xlu0 %v512, 127
    %v553 = vpop.permute.xlu0 %552
    %554 = vrot.lane.b32.xlu0 %v513, 127
    %v555 = vpop.permute.xlu0 %554
    %556 = vrot.lane.b32.xlu0 %v514, 127
    %v557 = vpop.permute.xlu0 %556
    %558 = vrot.lane.b32.xlu0 %v515, 127
    %v559 = vpop.permute.xlu0 %558
    %560 = vrot.lane.b32.xlu0 %v516, 127
    %v561 = vpop.permute.xlu0 %560
    %562 = vrot.lane.b32.xlu0 %v517, 127
    %v563 = vpop.permute.xlu0 %562
    %564 = vrot.lane.b32.xlu0 %v518, 127
    %v565 = vpop.permute.xlu0 %564
    %566 = vrot.lane.b32.xlu0 %v519, 127
    %v567 = vpop.permute.xlu0 %566
    %v584 = vsel %vm383, %v537, 0.0
    %v585 = vsel %vm384, %v539, 0.0
    %v586 = vsel %vm385, %v541, 0.0
    %v587 = vsel %vm386, %v543, 0.0
    %v588 = vsel %vm387, %v545, 0.0
    %v589 = vsel %vm388, %v547, 0.0
    %v590 = vsel %vm389, %v549, 0.0
    %v591 = vsel %vm390, %v551, 0.0
    %v592 = vsel %vm391, %v553, 0.0
    %v593 = vsel %vm392, %v555, 0.0
    %v594 = vsel %vm393, %v557, 0.0
    %v595 = vsel %vm394, %v559, 0.0
    %v596 = vsel %vm395, %v561, 0.0
    %v597 = vsel %vm396, %v563, 0.0
    %v598 = vsel %vm397, %v565, 0.0
    %v599 = vsel %vm398, %v567, 0.0
    %v600 = vsel %vm463, %v584, 0.0
    %v601 = vsel %vm463, %v585, 0.0
    %v602 = vadd.f32 %v600, %v601
    %v603 = vsel %vm463, %v586, 0.0
    %v604 = vadd.f32 %v602, %v603
    %v605 = vsel %vm463, %v587, 0.0
    %v606 = vadd.f32 %v604, %v605
    %v607 = vsel %vm463, %v588, 0.0
    %v608 = vadd.f32 %v606, %v607
    %v609 = vsel %vm463, %v589, 0.0
    %v610 = vadd.f32 %v608, %v609
    %v611 = vsel %vm463, %v590, 0.0
    %v612 = vadd.f32 %v610, %v611
    %v613 = vsel %vm463, %v591, 0.0
    %v614 = vadd.f32 %v612, %v613
    %v615 = vsel %vm463, %v592, 0.0
    %v616 = vadd.f32 %v614, %v615
    %v617 = vsel %vm463, %v593, 0.0
    %v618 = vadd.f32 %v616, %v617
    %v619 = vsel %vm463, %v594, 0.0
    %v620 = vadd.f32 %v618, %v619
    %v621 = vsel %vm463, %v595, 0.0
    %v622 = vadd.f32 %v620, %v621
    %v623 = vsel %vm463, %v596, 0.0
    %v624 = vadd.f32 %v622, %v623
    %v625 = vsel %vm463, %v597, 0.0
    %v626 = vadd.f32 %v624, %v625
    %v627 = vsel %vm463, %v598, 0.0
    %v628 = vadd.f32 %v626, %v627
    %v629 = vsel %vm463, %v599, 0.0
    %v630 = vadd.f32 %v628, %v629
    %631 = vadd.xlane.f32.xlu0 %v630
    %v632 = vpop.xlane.xlu0 %631
    %v633 = vrot.slane %v632, 4
    %v634 = vadd.f32 %v632, %v633
    %v635 = vrot.slane %v634, 2
    %v636 = vadd.f32 %v634, %v635
    %v637 = vrot.slane %v636, 1
    %v638 = vadd.f32 %v636, %v637
    %s639 = vtos %v638
    %s640 = scalar_lea.smem [#allocation6], 0
    %641 = sst [smem:[%s640]] %s503
    %s642 = scalar_lea.smem [#allocation6], 1
    %643 = sst [smem:[%s642]] %s639
    // Predicated region
    $region10: #{tpu_custom_call.1} parent=1 // pred_check
      _
    $region11: #{tpu_custom_call.1} parent=1 // pred_check_branch
      %645 = sbr.rel (0) target = $region13
    $region12: #{tpu_custom_call.1} parent=1 // pred_region
      %s646 = sadd.s32 0, 0
      %s648 = ssub.s32 16, 16
      %649 = vsyncadd [#allocation5], %s648
      %s650 = smul.addr %s646, 16
      %s651 = scalar_lea.hbm %s1, %s650
      %654 = dma.smem_to_hbm [#allocation6], 16, %s651, [#allocation5]
    $region13: #{tpu_custom_call.1} parent=1 // pred_fallthru
      _
    // Predicated region
    $region14: #{tpu_custom_call.1} parent=1 // pred_check
      _
    $region15: #{tpu_custom_call.1} parent=1 // pred_check_branch
      %656 = sbr.rel (0) target = $region17
    $region16: #{tpu_custom_call.1} parent=1 // pred_region
      %657 = dma.done [#allocation5], 16
    $region17: #{tpu_custom_call.1} parent=1 // pred_fallthru
      _
    %658 = sfence
    %659 = vsyncpa [#allocation4], 1
    %660 = vsyncpa [#allocation5], 1

</llo_original>
